<compile_context>
chip_gen: v6e
topology: v6e:2x2x1
jax: 0.10.0
libtpu: 0.0.40
codegen_flags: <defaults>
</compile_context>

<pallas_src>
import jax
import jax.numpy as jnp
from jax.experimental import pallas as pl
from jax.experimental.pallas import tpu as pltpu

# Conv hyper-params fixed by the module definition.
CIN = 3
COUT = 64
KH = KW = 3
KPAD = 32          # 27 patch elements zero-padded to 32 (MXU-friendly K)
GROUP = 4          # output pixels packed per row: 4*32 = 128 input lanes,
                   #                               4*64 = 256 output lanes


def _round_up(x, m):
    return (x + m - 1) // m * m


def _matmul_bias_kernel(x_ref, w_ref, b_ref, o_ref):
    """One packed matmul + bias per tile.

    x_ref: (TM, GROUP*KPAD)           lane-dense im2col patches (4 pixels/row)
    w_ref: (GROUP*KPAD, GROUP*COUT)   block-diagonal packed conv weight
    b_ref: (1, GROUP*COUT)            bias tiled per packed pixel
    o_ref: (TM, GROUP*COUT)           4 output pixels/row (unmasked stores)
    """
    acc = jnp.dot(x_ref[...], w_ref[...], preferred_element_type=jnp.float32)
    o_ref[...] = (acc + b_ref[...]).astype(o_ref.dtype)


def conv2d_pallas(x_nchw, w_oihw, bias, *, tile_m=512):
    """Equivalent of nn.Conv2d(3, 64, 3)(x) for NCHW float32 input."""
    B, C, H, W = x_nchw.shape
    assert C == CIN
    OH, OW = H - KH + 1, W - KW + 1
    M = B * OH * OW

    # ---- wrapper-side packing (layout only, no compute) -------------------
    # im2col: last-axis index = (kh*KW + kw)*CIN + cin.
    x_nhwc = jnp.transpose(x_nchw, (0, 2, 3, 1))                 # (B, H, W, 3)
    patches = jnp.concatenate(
        [x_nhwc[:, kh:kh + OH, kw:kw + OW, :]
         for kh in range(KH) for kw in range(KW)],
        axis=-1)                                                 # (B, OH, OW, 27)
    patches = jnp.pad(patches,
                      ((0, 0), (0, 0), (0, 0), (0, KPAD - KH * KW * CIN)))
    patches = patches.reshape(M, KPAD)                           # (M, 32)

    # Pack GROUP consecutive output pixels per row -> lane-dense 128 lanes.
    m_pad = _round_up(M, GROUP)
    patches = jnp.pad(patches, ((0, m_pad - M), (0, 0)))
    m_groups = m_pad // GROUP
    x_packed = patches.reshape(m_groups, GROUP * KPAD)           # (M/4, 128)

    # Tile the row dimension; pad so the grid divides evenly.
    tm = min(tile_m, _round_up(m_groups, 8))
    m_rows = _round_up(m_groups, tm)
    x_packed = jnp.pad(x_packed, ((0, m_rows - m_groups), (0, 0)))
    grid = (m_rows // tm,)

    # Weight: OIHW -> (kh, kw, cin, cout) -> (27, 64), pad K to 32, then
    # block-diagonal replicate GROUP times -> (128, 256). Done once here.
    w2d = jnp.transpose(w_oihw, (2, 3, 1, 0)).reshape(KH * KW * CIN, COUT)
    w2d = jnp.pad(w2d, ((0, KPAD - KH * KW * CIN), (0, 0)))      # (32, 64)
    w_big = jnp.kron(jnp.eye(GROUP, dtype=w2d.dtype), w2d)       # (128, 256)
    b_big = jnp.tile(bias, (GROUP,)).reshape(1, GROUP * COUT)    # (1, 256)

    cost = pl.CostEstimate(
        flops=2 * m_rows * (GROUP * KPAD) * (GROUP * COUT),
        transcendentals=0,
        bytes_accessed=4 * (x_packed.size + w_big.size + b_big.size
                            + m_rows * GROUP * COUT),
    )

    out = pl.pallas_call(
        _matmul_bias_kernel,
        out_shape=jax.ShapeDtypeStruct((m_rows, GROUP * COUT), x_nchw.dtype),
        grid=grid,
        in_specs=[
            pl.BlockSpec((tm, GROUP * KPAD), lambda i: (i, 0)),
            pl.BlockSpec((GROUP * KPAD, GROUP * COUT), lambda i: (0, 0)),
            pl.BlockSpec((1, GROUP * COUT), lambda i: (0, 0)),
        ],
        out_specs=pl.BlockSpec((tm, GROUP * COUT), lambda i: (i, 0)),
        compiler_params=pltpu.CompilerParams(
            dimension_semantics=("parallel",),
            vmem_limit_bytes=32 * 1024 * 1024),
        cost_estimate=cost,
    )(x_packed, w_big, b_big)

    # Unpack: (m_rows, 256) -> (m_pad, 64) -> (B, OH, OW, 64) -> NCHW.
    out = out[:m_groups].reshape(m_pad, COUT)[:M]
    out = out.reshape(B, OH, OW, COUT)
    return jnp.transpose(out, (0, 3, 1, 2))                      # (B, 64, OH, OW)


if __name__ == "__main__":
    key = jax.random.PRNGKey(0)
    kx, kw, kb = jax.random.split(key, 3)

    # Small shapes consistent with Conv2d(3, 64, 3): batch=2, spatial=16.
    B, H, W = 2, 16, 16
    x = jax.random.normal(kx, (B, CIN, H, W), dtype=jnp.float32)

    # Deterministic parameter init (PyTorch-style uniform fan-in bound).
    fan_in = CIN * KH * KW
    bound = 1.0 / (fan_in ** 0.5)
    weight = jax.random.uniform(kw, (COUT, CIN, KH, KW),
                                minval=-bound, maxval=bound, dtype=jnp.float32)
    bias = jax.random.uniform(kb, (COUT,),
                              minval=-bound, maxval=bound, dtype=jnp.float32)

    out = conv2d_pallas(x, weight, bias)
    out = jax.block_until_ready(out)

    # Cross-check against XLA's reference conv (same semantics as nn.Conv2d).
    ref = jax.lax.conv_general_dilated(
        x, weight, window_strides=(1, 1), padding="VALID",
        dimension_numbers=("NCHW", "OIHW", "NCHW"),
    ) + bias.reshape(1, COUT, 1, 1)

    assert out.shape == (B, COUT, H - 2, W - 2), out.shape
    assert jnp.allclose(out, ref, atol=1e-4, rtol=1e-4), "mismatch vs reference conv"

    print("KERNEL_OK")
</pallas_src>

<mosaic_0001>
module attributes {stable_mosaic.version = 11 : i64} {
  func.func @_matmul_bias_kernel(%arg0: i32, %arg1: memref<104x128xf32, #tpu.memory_space<vmem>>, %arg2: memref<128x256xf32, #tpu.memory_space<vmem>>, %arg3: memref<1x256xf32, #tpu.memory_space<vmem>>, %arg4: memref<104x256xf32, #tpu.memory_space<vmem>>) attributes {dimension_semantics = [#tpu.dimension_semantics<parallel>], iteration_bounds = array<i64: 1>, scalar_prefetch = 0 : i64, scratch_operands = 0 : i64, tpu.core_type = #tpu.core_type<tc>, window_params = [{transform_indices = @transform_0, window_bounds = array<i64: 104, 128>}, {pipeline_mode = #tpu.pipeline_mode<synchronous>, transform_indices = @transform_1, window_bounds = array<i64: 128, 256>}, {pipeline_mode = #tpu.pipeline_mode<synchronous>, transform_indices = @transform_2, window_bounds = array<i64: 1, 256>}, {transform_indices = @transform_3, window_bounds = array<i64: 104, 256>}]} {
    %c0 = arith.constant 0 : index
    %c0_0 = arith.constant 0 : index
    %0 = vector.load %arg1[%c0, %c0_0] : memref<104x128xf32, #tpu.memory_space<vmem>>, vector<104x128xf32>
    %c0_1 = arith.constant 0 : index
    %c0_2 = arith.constant 0 : index
    %1 = vector.load %arg2[%c0_1, %c0_2] : memref<128x256xf32, #tpu.memory_space<vmem>>, vector<128x256xf32>
    %cst = arith.constant dense<0.000000e+00> : vector<104x256xf32>
    %2 = tpu.matmul %0, %1, %cst {dimension_numbers = #tpu.dot_dimension_numbers<[1], [0], [0], [1], [0, 0, 1, 1], [], []>} : vector<104x128xf32>, vector<128x256xf32>, vector<104x256xf32> -> vector<104x256xf32>
    %c0_3 = arith.constant 0 : index
    %c0_4 = arith.constant 0 : index
    %3 = vector.load %arg3[%c0_3, %c0_4] : memref<1x256xf32, #tpu.memory_space<vmem>>, vector<1x256xf32>
    %4 = vector.broadcast %3 : vector<1x256xf32> to vector<104x256xf32>
    %5 = arith.addf %2, %4 : vector<104x256xf32>
    %c0_5 = arith.constant 0 : index
    %c0_6 = arith.constant 0 : index
    %6 = vector.load %arg4[%c0_5, %c0_6] : memref<104x256xf32, #tpu.memory_space<vmem>>, vector<104x256xf32>
    tpu.vector_store %arg4[%c0_5, %c0_6], %5 {strides = array<i32>} : memref<104x256xf32, #tpu.memory_space<vmem>>, vector<104x256xf32>,
    return
  }
  func.func @transform_0(%arg0: i32) -> (i32, i32) {
    %c0_i32 = arith.constant 0 : i32
    %c0_i32_0 = arith.constant 0 : i32
    return %arg0, %c0_i32 : i32, i32
  }
  func.func @transform_1(%arg0: i32) -> (i32, i32) {
    %c0_i32 = arith.constant 0 : i32
    %c0_i32_0 = arith.constant 0 : i32
    %c0_i32_1 = arith.constant 0 : i32
    return %c0_i32, %c0_i32_0 : i32, i32
  }
  func.func @transform_2(%arg0: i32) -> (i32, i32) {
    %c0_i32 = arith.constant 0 : i32
    %c0_i32_0 = arith.constant 0 : i32
    %c0_i32_1 = arith.constant 0 : i32
    return %c0_i32, %c0_i32_0 : i32, i32
  }
  func.func @transform_3(%arg0: i32) -> (i32, i32) {
    %c0_i32 = arith.constant 0 : i32
    %c0_i32_0 = arith.constant 0 : i32
    return %arg0, %c0_i32 : i32, i32
  }
}

</mosaic_0001>

<llo_original>
// kernel: tpu_custom_call.1
$region0: #{tpu_custom_call.1}
  #allocation0 [shape = 'u32[]', space=smem, size = 0x4, offset = 0x4, fixed_abs, tag = 'smem constant byte address 0x4 - core index']
  #allocation1 [shape = 'u32[144,128]{1,0:T(1,128)}', space=vmem, size = 0x12000, scoped, tag = 'internal scratch']
  %s0 = inlined_call_operand.hbm [shape: f32[104,128], index: 0, kind: input, shape index: {}]
  %s1 = inlined_call_operand.hbm [shape: f32[128,256], index: 1, kind: input, shape index: {}]
  %s2 = inlined_call_operand.vmem [shape: f32[1,256], index: 2, kind: input, shape index: {}]
  %s3 = inlined_call_operand.hbm [shape: f32[104,256], index: 3, kind: output, shape index: {}]
  %s4 = sld [smem:[#allocation0]]
  $region30: #{tpu_custom_call.1} parent=0
    _
  %s6 = ssub.s32 1, %s4
  %s7 = scalar_select 0, %s6, %s4
  $region1: #{tpu_custom_call.1} parent=0
    #allocation2 [shape = 'u8[53248]{0}', space=vmem, size = 0xd000, scoped, tag = 'input window, operand 0, single buffered']
    #allocation3 [shape = 's32[1]{0}', space=sflag, size = 0x4, scoped, tag = 'scoped memory for tpu_custom_call.1']
    #allocation4 [shape = 's32[1]{0}', space=sflag, size = 0x4, scoped, tag = 'scoped memory for tpu_custom_call.1']
    #allocation5 [shape = 'u8[131072]{0}', space=vmem, size = 0x20000, scoped, tag = 'input window, operand 1, single buffered']
    #allocation6 [shape = 's32[1]{0}', space=sflag, size = 0x4, scoped, tag = 'scoped memory for tpu_custom_call.1']
    #allocation7 [shape = 'u8[106496]{0}', space=vmem, size = 0x1a000, scoped, tag = 'output window, operand 0, single buffered']
    %8 = vsyncpa [#allocation3], 0
    %9 = vsyncpa [#allocation6], 0
    %10 = vsyncpa [#allocation4], 0
    // Predicated region
    $region2: #{tpu_custom_call.1} parent=1 // pred_check
      _
    $region3: #{tpu_custom_call.1} parent=1 // pred_check_branch
      %12 = sbr.rel (0) target = $region5
    $region4: #{tpu_custom_call.1} parent=1 // pred_region
      %s14 = ssub.s32 1664, 1664
      %15 = vsyncadd [#allocation3], %s14
      %s16 = sshll.u32 [#allocation2], 4
      %s17 = int_to_ptr.vmem [resolvable:$true] %s16
      %22 = dma.hbm_to_vmem [thread:$0]  %s0, 1664, %s17, [#allocation3], 128, 128, 8
    $region5: #{tpu_custom_call.1} parent=1 // pred_fallthru
      _
    // Predicated region
    $region6: #{tpu_custom_call.1} parent=1 // pred_check
      _
    $region7: #{tpu_custom_call.1} parent=1 // pred_check_branch
      %24 = sbr.rel (0) target = $region9
    $region8: #{tpu_custom_call.1} parent=1 // pred_region
      %s26 = ssub.s32 4096, 4096
      %27 = vsyncadd [#allocation6], %s26
      %s28 = sshll.u32 [#allocation5], 4
      %s29 = int_to_ptr.vmem [resolvable:$true] %s28
      %34 = dma.hbm_to_vmem [thread:$0]  %s1, 4096, %s29, [#allocation6], 256, 256, 16
    $region9: #{tpu_custom_call.1} parent=1 // pred_fallthru
      _
    // Predicated region
    $region10: #{tpu_custom_call.1} parent=1 // pred_check
      _
    $region11: #{tpu_custom_call.1} parent=1 // pred_check_branch
      %36 = sbr.rel (0) target = $region13
    $region12: #{tpu_custom_call.1} parent=1 // pred_region
      _
    $region13: #{tpu_custom_call.1} parent=1 // pred_fallthru
      _
    // Predicated region
    $region14: #{tpu_custom_call.1} parent=1 // pred_check
      _
    $region15: #{tpu_custom_call.1} parent=1 // pred_check_branch
      %38 = sbr.rel (0) target = $region17
    $region16: #{tpu_custom_call.1} parent=1 // pred_region
      %39 = dma.done [#allocation3], 1664
    $region17: #{tpu_custom_call.1} parent=1 // pred_fallthru
      _
    // Predicated region
    $region18: #{tpu_custom_call.1} parent=1 // pred_check
      _
    $region19: #{tpu_custom_call.1} parent=1 // pred_check_branch
      %41 = sbr.rel (0) target = $region21
    $region20: #{tpu_custom_call.1} parent=1 // pred_region
      %42 = dma.done [#allocation6], 4096
    $region21: #{tpu_custom_call.1} parent=1 // pred_fallthru
      _
    %v43 = vld [vmem:[#allocation2] sm:$0xff]
    %v44 = vld [vmem:[#allocation2 + $0x8] sm:$0xff]
    %v45 = vld [vmem:[#allocation2 + $0x10] sm:$0xff]
    %v46 = vld [vmem:[#allocation2 + $0x18] sm:$0xff]
    %v47 = vld [vmem:[#allocation2 + $0x20] sm:$0xff]
    %v48 = vld [vmem:[#allocation2 + $0x28] sm:$0xff]
    %v49 = vld [vmem:[#allocation2 + $0x30] sm:$0xff]
    %v50 = vld [vmem:[#allocation2 + $0x38] sm:$0xff]
    %v51 = vld [vmem:[#allocation2 + $0x40] sm:$0xff]
    %v52 = vld [vmem:[#allocation2 + $0x48] sm:$0xff]
    %v53 = vld [vmem:[#allocation2 + $0x50] sm:$0xff]
    %v54 = vld [vmem:[#allocation2 + $0x58] sm:$0xff]
    %v55 = vld [vmem:[#allocation2 + $0x60] sm:$0xff]
    %v56 = vld [vmem:[#allocation5] sm:$0xff]
    %v57 = vld [vmem:[#allocation5 + $0x8] sm:$0xff]
    %v58 = vld [vmem:[#allocation5 + $0x10] sm:$0xff]
    %v59 = vld [vmem:[#allocation5 + $0x18] sm:$0xff]
    %v60 = vld [vmem:[#allocation5 + $0x20] sm:$0xff]
    %v61 = vld [vmem:[#allocation5 + $0x28] sm:$0xff]
    %v62 = vld [vmem:[#allocation5 + $0x30] sm:$0xff]
    %v63 = vld [vmem:[#allocation5 + $0x38] sm:$0xff]
    %v64 = vld [vmem:[#allocation5 + $0x40] sm:$0xff]
    %v65 = vld [vmem:[#allocation5 + $0x48] sm:$0xff]
    %v66 = vld [vmem:[#allocation5 + $0x50] sm:$0xff]
    %v67 = vld [vmem:[#allocation5 + $0x58] sm:$0xff]
    %v68 = vld [vmem:[#allocation5 + $0x60] sm:$0xff]
    %v69 = vld [vmem:[#allocation5 + $0x68] sm:$0xff]
    %v70 = vld [vmem:[#allocation5 + $0x70] sm:$0xff]
    %v71 = vld [vmem:[#allocation5 + $0x78] sm:$0xff]
    %v72 = vld [vmem:[#allocation5 + $0x80] sm:$0xff]
    %v73 = vld [vmem:[#allocation5 + $0x88] sm:$0xff]
    %v74 = vld [vmem:[#allocation5 + $0x90] sm:$0xff]
    %v75 = vld [vmem:[#allocation5 + $0x98] sm:$0xff]
    %v76 = vld [vmem:[#allocation5 + $0xa0] sm:$0xff]
    %v77 = vld [vmem:[#allocation5 + $0xa8] sm:$0xff]
    %v78 = vld [vmem:[#allocation5 + $0xb0] sm:$0xff]
    %v79 = vld [vmem:[#allocation5 + $0xb8] sm:$0xff]
    %v80 = vld [vmem:[#allocation5 + $0xc0] sm:$0xff]
    %v81 = vld [vmem:[#allocation5 + $0xc8] sm:$0xff]
    %v82 = vld [vmem:[#allocation5 + $0xd0] sm:$0xff]
    %v83 = vld [vmem:[#allocation5 + $0xd8] sm:$0xff]
    %v84 = vld [vmem:[#allocation5 + $0xe0] sm:$0xff]
    %v85 = vld [vmem:[#allocation5 + $0xe8] sm:$0xff]
    %v86 = vld [vmem:[#allocation5 + $0xf0] sm:$0xff]
    %v87 = vld [vmem:[#allocation5 + $0xf8] sm:$0xff]
    %v88 = vld [vmem:[%s2] sm:$0x3]
    %v90 = vlaneseq
    %v91 = vshrl.u32 %v90, 7
    %v92 = vsub.s32 0, %v91
    %v93 = vrot.slane %v88, %v92
    %v94 = vlaneseq
    %v95 = vshrl.u32 %v94, 7
    %v96 = vsub.s32 1, %v95
    %v97 = vrot.slane %v88, %v96
    %100 = vmatprep.subr.mxu0 %v87
    %101 = vmatpush1.msra.mxu0 %v86
    %102 = vmatprep.subr.mxu0 %v85
    %103 = vmatpush1.msra.mxu0 %v84
    %104 = vmatprep.subr.mxu0 %v83
    %105 = vmatpush1.msra.mxu0 %v82
    %106 = vmatprep.subr.mxu0 %v81
    %107 = vmatpush1.msra.mxu0 %v80
    %108 = vmatprep.subr.mxu0 %v79
    %109 = vmatpush1.msra.mxu0 %v78
    %110 = vmatprep.subr.mxu0 %v77
    %111 = vmatpush1.msra.mxu0 %v76
    %112 = vmatprep.subr.mxu0 %v75
    %113 = vmatpush1.msra.mxu0 %v74
    %114 = vmatprep.subr.mxu0 %v73
    %115 = vmatpush1.msra.mxu0 %v72
    %116 = vmatprep.subr.mxu0 %v71
    %117 = vmatpush1.msra.mxu0 %v70
    %118 = vmatprep.subr.mxu0 %v69
    %119 = vmatpush1.msra.mxu0 %v68
    %120 = vmatprep.subr.mxu0 %v67
    %121 = vmatpush1.msra.mxu0 %v66
    %122 = vmatprep.subr.mxu0 %v65
    %123 = vmatpush1.msra.mxu0 %v64
    %124 = vmatprep.subr.mxu0 %v63
    %125 = vmatpush1.msra.mxu0 %v62
    %126 = vmatprep.subr.mxu0 %v61
    %127 = vmatpush1.msra.mxu0 %v60
    %128 = vmatprep.subr.mxu0 %v59
    %129 = vmatpush1.msra.mxu0 %v58
    %130 = vmatprep.subr.mxu0 %v57
    %131 = vmatpush1.msra.mxu0 %v56
    %132 = vmatprep.subr.mxu0 0.0
    %133 = vmatpush2.msra.mxu0 0.0
    %134 = vmatprep.subr.mxu0 0.0
    %135 = vmatpush2.msra.mxu0 0.0
    %136 = vmatprep.subr.mxu0 0.0
    %137 = vmatpush2.msra.mxu0 0.0
    %138 = vmatprep.subr.mxu0 0.0
    %139 = vmatpush2.msra.mxu0 0.0
    %140 = vmatprep.subr.mxu0 0.0
    %141 = vmatpush2.msra.mxu0 0.0
    %142 = vmatprep.subr.mxu0 0.0
    %143 = vmatpush2.msra.mxu0 0.0
    %144 = vmatprep.subr.mxu0 0.0
    %145 = vmatpush2.msra.mxu0 0.0
    %146 = vmatprep.subr.mxu0 0.0
    %147 = vmatpush2.msra.mxu0 0.0
    %148 = vmatprep.subr.mxu0 0.0
    %149 = vmatpush2.msra.mxu0 0.0
    %150 = vmatprep.subr.mxu0 0.0
    %151 = vmatpush2.msra.mxu0 0.0
    %152 = vmatprep.subr.mxu0 0.0
    %153 = vmatpush2.msra.mxu0 0.0
    %154 = vmatprep.subr.mxu0 0.0
    %155 = vmatpush2.msra.mxu0 0.0
    %156 = vmatprep.subr.mxu0 0.0
    %157 = vmatpush2.msra.mxu0 0.0
    %158 = vmatprep.subr.mxu0 0.0
    %159 = vmatpush2.msra.mxu0 0.0
    %160 = vmatprep.subr.mxu0 0.0
    %161 = vmatpush2.msra.mxu0 0.0
    %162 = vmatprep.subr.mxu0 0.0
    %163 = vmatpush2.msra.mxu0 0.0
    %164 = vmatprep.mubr.f32.mxu0 0.0
    %165 = vmatmul.mubr.f32.gmra.mxu0 %v43
    %v166 = vpop.f32.mrf.mxu0
    %v167 = vadd.f32 %v93, %v166
    %v168 = vpop.f32.mrf.mxu0
    %v169 = vadd.f32 %v97, %v168
    %170 = vmatprep.mubr.f32.mxu0 0.0
    %171 = vmatmul.mubr.f32.gmra.mxu0 %v44
    %v172 = vpop.f32.mrf.mxu0
    %v173 = vadd.f32 %v93, %v172
    %v174 = vpop.f32.mrf.mxu0
    %v175 = vadd.f32 %v97, %v174
    %176 = vmatprep.mubr.f32.mxu0 0.0
    %177 = vmatmul.mubr.f32.gmra.mxu0 %v45
    %v178 = vpop.f32.mrf.mxu0
    %v179 = vadd.f32 %v93, %v178
    %v180 = vpop.f32.mrf.mxu0
    %v181 = vadd.f32 %v97, %v180
    %182 = vmatprep.mubr.f32.mxu0 0.0
    %183 = vmatmul.mubr.f32.gmra.mxu0 %v46
    %v184 = vpop.f32.mrf.mxu0
    %v185 = vadd.f32 %v93, %v184
    %v186 = vpop.f32.mrf.mxu0
    %v187 = vadd.f32 %v97, %v186
    %188 = vmatprep.mubr.f32.mxu0 0.0
    %189 = vmatmul.mubr.f32.gmra.mxu0 %v47
    %v190 = vpop.f32.mrf.mxu0
    %v191 = vadd.f32 %v93, %v190
    %v192 = vpop.f32.mrf.mxu0
    %v193 = vadd.f32 %v97, %v192
    %194 = vmatprep.mubr.f32.mxu0 0.0
    %195 = vmatmul.mubr.f32.gmra.mxu0 %v48
    %v196 = vpop.f32.mrf.mxu0
    %v197 = vadd.f32 %v93, %v196
    %v198 = vpop.f32.mrf.mxu0
    %v199 = vadd.f32 %v97, %v198
    %200 = vmatprep.mubr.f32.mxu0 0.0
    %201 = vmatmul.mubr.f32.gmra.mxu0 %v49
    %v202 = vpop.f32.mrf.mxu0
    %v203 = vadd.f32 %v93, %v202
    %v204 = vpop.f32.mrf.mxu0
    %v205 = vadd.f32 %v97, %v204
    %206 = vmatprep.mubr.f32.mxu0 0.0
    %207 = vmatmul.mubr.f32.gmra.mxu0 %v50
    %v208 = vpop.f32.mrf.mxu0
    %v209 = vadd.f32 %v93, %v208
    %v210 = vpop.f32.mrf.mxu0
    %v211 = vadd.f32 %v97, %v210
    %212 = vmatprep.mubr.f32.mxu0 0.0
    %213 = vmatmul.mubr.f32.gmra.mxu0 %v51
    %v214 = vpop.f32.mrf.mxu0
    %v215 = vadd.f32 %v93, %v214
    %v216 = vpop.f32.mrf.mxu0
    %v217 = vadd.f32 %v97, %v216
    %218 = vmatprep.mubr.f32.mxu0 0.0
    %219 = vmatmul.mubr.f32.gmra.mxu0 %v52
    %v220 = vpop.f32.mrf.mxu0
    %v221 = vadd.f32 %v93, %v220
    %v222 = vpop.f32.mrf.mxu0
    %v223 = vadd.f32 %v97, %v222
    %224 = vmatprep.mubr.f32.mxu0 0.0
    %225 = vmatmul.mubr.f32.gmra.mxu0 %v53
    %v226 = vpop.f32.mrf.mxu0
    %v227 = vadd.f32 %v93, %v226
    %v228 = vpop.f32.mrf.mxu0
    %v229 = vadd.f32 %v97, %v228
    %230 = vmatprep.mubr.f32.mxu0 0.0
    %231 = vmatmul.mubr.f32.gmra.mxu0 %v54
    %v232 = vpop.f32.mrf.mxu0
    %v233 = vadd.f32 %v93, %v232
    %v234 = vpop.f32.mrf.mxu0
    %v235 = vadd.f32 %v97, %v234
    %236 = vmatprep.mubr.f32.mxu0 0.0
    %237 = vmatmul.mubr.f32.gmra.mxu0 %v55
    %v238 = vpop.f32.mrf.mxu0
    %v239 = vadd.f32 %v93, %v238
    %v240 = vpop.f32.mrf.mxu0
    %v241 = vadd.f32 %v97, %v240
    %242 = vdwg.mxu0
    %243 = vst [vmem:[#allocation7] sm:$0xff] %v167
    %244 = vst [vmem:[#allocation7 + $0x8] sm:$0xff] %v169
    %245 = vst [vmem:[#allocation7 + $0x10] sm:$0xff] %v173
    %246 = vst [vmem:[#allocation7 + $0x18] sm:$0xff] %v175
    %247 = vst [vmem:[#allocation7 + $0x20] sm:$0xff] %v179
    %248 = vst [vmem:[#allocation7 + $0x28] sm:$0xff] %v181
    %249 = vst [vmem:[#allocation7 + $0x30] sm:$0xff] %v185
    %250 = vst [vmem:[#allocation7 + $0x38] sm:$0xff] %v187
    %251 = vst [vmem:[#allocation7 + $0x40] sm:$0xff] %v191
    %252 = vst [vmem:[#allocation7 + $0x48] sm:$0xff] %v193
    %253 = vst [vmem:[#allocation7 + $0x50] sm:$0xff] %v197
    %254 = vst [vmem:[#allocation7 + $0x58] sm:$0xff] %v199
    %255 = vst [vmem:[#allocation7 + $0x60] sm:$0xff] %v203
    %256 = vst [vmem:[#allocation7 + $0x68] sm:$0xff] %v205
    %257 = vst [vmem:[#allocation7 + $0x70] sm:$0xff] %v209
    %258 = vst [vmem:[#allocation7 + $0x78] sm:$0xff] %v211
    %259 = vst [vmem:[#allocation7 + $0x80] sm:$0xff] %v215
    %260 = vst [vmem:[#allocation7 + $0x88] sm:$0xff] %v217
    %261 = vst [vmem:[#allocation7 + $0x90] sm:$0xff] %v221
    %262 = vst [vmem:[#allocation7 + $0x98] sm:$0xff] %v223
    %263 = vst [vmem:[#allocation7 + $0xa0] sm:$0xff] %v227
    %264 = vst [vmem:[#allocation7 + $0xa8] sm:$0xff] %v229
    %265 = vst [vmem:[#allocation7 + $0xb0] sm:$0xff] %v233
    %266 = vst [vmem:[#allocation7 + $0xb8] sm:$0xff] %v235
    %267 = vst [vmem:[#allocation7 + $0xc0] sm:$0xff] %v239
    %268 = vst [vmem:[#allocation7 + $0xc8] sm:$0xff] %v241
    // Predicated region
    $region22: #{tpu_custom_call.1} parent=1 // pred_check
      _
    $region23: #{tpu_custom_call.1} parent=1 // pred_check_branch
      %270 = sbr.rel (0) target = $region25
    $region24: #{tpu_custom_call.1} parent=1 // pred_region
      %s272 = ssub.s32 3328, 3328
      %273 = vsyncadd [#allocation4], %s272
      %s274 = sshll.u32 [#allocation7], 4
      %s275 = int_to_ptr.vmem [resolvable:$true] %s274
      %280 = dma.vmem_to_hbm [thread:$0]  %s275, 3328, %s3, [#allocation4], 256, 256, 16
    $region25: #{tpu_custom_call.1} parent=1 // pred_fallthru
      _
    // Predicated region
    $region26: #{tpu_custom_call.1} parent=1 // pred_check
      _
    $region27: #{tpu_custom_call.1} parent=1 // pred_check_branch
      %282 = sbr.rel (0) target = $region29
    $region28: #{tpu_custom_call.1} parent=1 // pred_region
      %283 = dma.done [#allocation4], 3328
    $region29: #{tpu_custom_call.1} parent=1 // pred_fallthru
      _
    %284 = vsyncpa [#allocation3], 1
    %285 = vsyncpa [#allocation6], 1
    %286 = vsyncpa [#allocation4], 1

</llo_original>
